<compile_context>
chip_gen: v7x
topology: tpu7x:2x2x1
jax: 0.10.0
libtpu: 0.0.40
codegen_flags: <defaults>
</compile_context>

<pallas_src>
import functools

import jax
import jax.numpy as jnp
from jax.experimental import pallas as pl
from jax.experimental.pallas import tpu as pltpu

LANE = 128


def _round_up(x, m):
    return ((x + m - 1) // m) * m


def actor_kernel(x_ref, w1_ref, b1_ref, w2_ref, b2_ref, w3_ref, b3_ref, o_ref):
    # Fused 3-layer MLP for one batch tile.
    x = x_ref[...].astype(jnp.bfloat16)                       # in-kernel f32->bf16 cast
    h1 = jnp.dot(x, w1_ref[...], preferred_element_type=jnp.float32) + b1_ref[...]
    h1 = jnp.maximum(h1, 0.0)
    h2 = jnp.dot(h1.astype(jnp.bfloat16), w2_ref[...],
                 preferred_element_type=jnp.float32) + b2_ref[...]
    h2 = jnp.maximum(h2, 0.0)
    o = jnp.dot(h2.astype(jnp.bfloat16), w3_ref[...],
                preferred_element_type=jnp.float32) + b3_ref[...]
    o_ref[...] = o.astype(o_ref.dtype)                        # bf16 lane-dense store


def prepare_actor_params(params):
    """One-time parameter prep (off the hot path): pad the output layer to 128 lanes
    for dense stores and cast matmul weights to bf16 for the MXU. Biases stay f32."""
    w1, b1, w2, b2, w3, b3 = params
    hidden = w1.shape[1]
    n_actions = w3.shape[1]
    n_pad = _round_up(n_actions, LANE)
    w3p = jnp.zeros((hidden, n_pad), jnp.float32).at[:, :n_actions].set(w3)
    b3p = jnp.zeros((1, n_pad), jnp.float32).at[:, :n_actions].set(b3)
    prepared = (
        w1.astype(jnp.bfloat16), b1.astype(jnp.float32),
        w2.astype(jnp.bfloat16), b2.astype(jnp.float32),
        w3p.astype(jnp.bfloat16), b3p.astype(jnp.float32),
    )
    return prepared, n_actions


@functools.partial(jax.jit, static_argnames=("n_actions", "tile_b"))
def actor_forward(x, prepared, *, n_actions, tile_b=2048):
    """x: [batch, input_dims] f32. prepared: output of prepare_actor_params.
    Returns [batch, n_actions] f32 (same semantics as the PyTorch Actor.forward)."""
    w1, b1, w2, b2, w3p, b3p = prepared
    batch, input_dims = x.shape
    hidden = w1.shape[1]
    n_pad = w3p.shape[1]

    # Big tiles (fewer grid steps, larger DMAs), but keep >=2 grid steps when the
    # batch allows it so both v7x TensorCores get work on the "parallel" axis.
    tb = max(8, min(tile_b, _round_up(pl.cdiv(batch, 2), 8)))
    grid = (pl.cdiv(batch, tb),)  # ragged last block handled by Pallas (no pad copy)

    flops = 2 * batch * (input_dims * hidden + hidden * hidden + hidden * n_pad)
    bytes_accessed = (
        batch * input_dims * 4                       # x (f32, cast in-kernel)
        + (input_dims + hidden) * hidden * 2         # w1, w2 (bf16)
        + hidden * n_pad * 2                         # w3 (bf16, padded)
        + (2 * hidden + n_pad) * 4                   # biases (f32)
        + batch * n_pad * 2                          # output (bf16)
    )

    out = pl.pallas_call(
        actor_kernel,
        out_shape=jax.ShapeDtypeStruct((batch, n_pad), jnp.bfloat16),
        grid=grid,
        in_specs=[
            pl.BlockSpec((tb, input_dims), lambda i: (i, 0)),       # x tile
            pl.BlockSpec((input_dims, hidden), lambda i: (0, 0)),   # w1 (resident)
            pl.BlockSpec((1, hidden), lambda i: (0, 0)),            # b1
            pl.BlockSpec((hidden, hidden), lambda i: (0, 0)),       # w2
            pl.BlockSpec((1, hidden), lambda i: (0, 0)),            # b2
            pl.BlockSpec((hidden, n_pad), lambda i: (0, 0)),        # w3 (padded)
            pl.BlockSpec((1, n_pad), lambda i: (0, 0)),             # b3 (padded)
        ],
        out_specs=pl.BlockSpec((tb, n_pad), lambda i: (i, 0)),
        compiler_params=pltpu.CompilerParams(
            dimension_semantics=("parallel",),
        ),
        cost_estimate=pl.CostEstimate(
            flops=flops, transcendentals=0, bytes_accessed=bytes_accessed),
    )(x, w1, b1, w2, b2, w3p, b3p)

    # Trim padded lanes and upcast; padded rows (ragged last block) never reach HBM
    # thanks to the masked final store, and row count already equals `batch`.
    return out[:, :n_actions].astype(jnp.float32)


def init_actor_params(key, input_dims=10, hidden=128, n_actions=5):
    """Deterministic init mirroring nn.Linear's U(-1/sqrt(fan_in), 1/sqrt(fan_in)),
    with out.weight scaled by 0.1 and out.bias zeroed (as in Actor.__init__)."""
    k1, k2, k3, k4, k5, k6 = jax.random.split(key, 6)

    def lin(kw, kb, fan_in, fan_out):
        bound = 1.0 / jnp.sqrt(jnp.float32(fan_in))
        w = jax.random.uniform(kw, (fan_in, fan_out), jnp.float32, -bound, bound)
        b = jax.random.uniform(kb, (1, fan_out), jnp.float32, -bound, bound)
        return w, b

    w1, b1 = lin(k1, k2, input_dims, hidden)
    w2, b2 = lin(k3, k4, hidden, hidden)
    w3, b3 = lin(k5, k6, hidden, n_actions)
    w3 = w3 * 0.1
    b3 = jnp.zeros_like(b3)
    return (w1, b1, w2, b2, w3, b3)


def actor_reference_f32(x, params):
    """Pure-f32 reference identical to the PyTorch Actor.forward."""
    w1, b1, w2, b2, w3, b3 = params
    h1 = jnp.maximum(x @ w1 + b1, 0.0)
    h2 = jnp.maximum(h1 @ w2 + b2, 0.0)
    return h2 @ w3 + b3


if __name__ == "__main__":
    key = jax.random.PRNGKey(0)
    kx, kp = jax.random.split(key)

    batch, input_dims, hidden, n_actions = 512, 10, 128, 5
    x = jax.random.normal(kx, (batch, input_dims), jnp.float32)
    params = init_actor_params(kp, input_dims, hidden, n_actions)
    prepared, n_act = prepare_actor_params(params)

    # Full batch: 512 rows -> tile of 256 -> 2 grid steps (exercises the pipeline
    # and keeps both v7x TensorCores busy).
    out = jax.block_until_ready(actor_forward(x, prepared, n_actions=n_act))
    assert out.shape == (batch, n_actions)

    ref_f32 = actor_reference_f32(x, params)
    # bf16 MXU operands + bf16 output store vs. pure-f32 PyTorch forward.
    assert jnp.allclose(out, ref_f32, atol=5e-2, rtol=5e-2)

    # Ragged-batch path: batch=37 -> tile of 24, grid of 2 with a masked last block
    # (no explicit padding copy in the wrapper).
    out_ragged = jax.block_until_ready(actor_forward(x[:37], prepared, n_actions=n_act))
    assert out_ragged.shape == (37, n_actions)
    assert jnp.allclose(out_ragged, ref_f32[:37], atol=5e-2, rtol=5e-2)

    print("KERNEL_OK")
</pallas_src>

<mosaic_0001>
module attributes {stable_mosaic.version = 11 : i64} {
  func.func @actor_kernel(%arg0: i32, %arg1: memref<256x10xf32, #tpu.memory_space<vmem>>, %arg2: memref<10x128xbf16, #tpu.memory_space<vmem>>, %arg3: memref<1x128xf32, #tpu.memory_space<vmem>>, %arg4: memref<128x128xbf16, #tpu.memory_space<vmem>>, %arg5: memref<1x128xf32, #tpu.memory_space<vmem>>, %arg6: memref<128x128xbf16, #tpu.memory_space<vmem>>, %arg7: memref<1x128xf32, #tpu.memory_space<vmem>>, %arg8: memref<256x128xbf16, #tpu.memory_space<vmem>>) attributes {dimension_semantics = [#tpu.dimension_semantics<parallel>], iteration_bounds = array<i64: 2>, scalar_prefetch = 0 : i64, scratch_operands = 0 : i64, tpu.core_type = #tpu.core_type<tc>, window_params = [{transform_indices = @transform_0, window_bounds = array<i64: 256, 10>}, {pipeline_mode = #tpu.pipeline_mode<synchronous>, transform_indices = @transform_1, window_bounds = array<i64: 10, 128>}, {pipeline_mode = #tpu.pipeline_mode<synchronous>, transform_indices = @transform_2, window_bounds = array<i64: 1, 128>}, {pipeline_mode = #tpu.pipeline_mode<synchronous>, transform_indices = @transform_3, window_bounds = array<i64: 128, 128>}, {pipeline_mode = #tpu.pipeline_mode<synchronous>, transform_indices = @transform_4, window_bounds = array<i64: 1, 128>}, {pipeline_mode = #tpu.pipeline_mode<synchronous>, transform_indices = @transform_5, window_bounds = array<i64: 128, 128>}, {pipeline_mode = #tpu.pipeline_mode<synchronous>, transform_indices = @transform_6, window_bounds = array<i64: 1, 128>}, {transform_indices = @transform_7, window_bounds = array<i64: 256, 128>}]} {
    %c0 = arith.constant 0 : index
    %c0_0 = arith.constant 0 : index
    %0 = vector.load %arg1[%c0, %c0_0] : memref<256x10xf32, #tpu.memory_space<vmem>>, vector<256x10xf32>
    %1 = arith.truncf %0 : vector<256x10xf32> to vector<256x10xbf16>
    %c0_1 = arith.constant 0 : index
    %c0_2 = arith.constant 0 : index
    %2 = vector.load %arg2[%c0_1, %c0_2] : memref<10x128xbf16, #tpu.memory_space<vmem>>, vector<10x128xbf16>
    %cst = arith.constant dense<0.000000e+00> : vector<256x128xf32>
    %3 = tpu.matmul %1, %2, %cst {dimension_numbers = #tpu.dot_dimension_numbers<[1], [0], [0], [1], [0, 0, 1, 1], [], []>} : vector<256x10xbf16>, vector<10x128xbf16>, vector<256x128xf32> -> vector<256x128xf32>
    %c0_3 = arith.constant 0 : index
    %c0_4 = arith.constant 0 : index
    %4 = vector.load %arg3[%c0_3, %c0_4] : memref<1x128xf32, #tpu.memory_space<vmem>>, vector<1x128xf32>
    %5 = vector.broadcast %4 : vector<1x128xf32> to vector<256x128xf32>
    %6 = arith.addf %3, %5 : vector<256x128xf32>
    %cst_5 = arith.constant 0.000000e+00 : f32
    %7 = vector.broadcast %cst_5 : f32 to vector<256x128xf32>
    %8 = arith.maximumf %6, %7 : vector<256x128xf32>
    %9 = arith.truncf %8 : vector<256x128xf32> to vector<256x128xbf16>
    %c0_6 = arith.constant 0 : index
    %c0_7 = arith.constant 0 : index
    %10 = vector.load %arg4[%c0_6, %c0_7] : memref<128x128xbf16, #tpu.memory_space<vmem>>, vector<128x128xbf16>
    %cst_8 = arith.constant dense<0.000000e+00> : vector<256x128xf32>
    %11 = tpu.matmul %9, %10, %cst_8 {dimension_numbers = #tpu.dot_dimension_numbers<[1], [0], [0], [1], [0, 0, 1, 1], [], []>} : vector<256x128xbf16>, vector<128x128xbf16>, vector<256x128xf32> -> vector<256x128xf32>
    %c0_9 = arith.constant 0 : index
    %c0_10 = arith.constant 0 : index
    %12 = vector.load %arg5[%c0_9, %c0_10] : memref<1x128xf32, #tpu.memory_space<vmem>>, vector<1x128xf32>
    %13 = vector.broadcast %12 : vector<1x128xf32> to vector<256x128xf32>
    %14 = arith.addf %11, %13 : vector<256x128xf32>
    %cst_11 = arith.constant 0.000000e+00 : f32
    %15 = vector.broadcast %cst_11 : f32 to vector<256x128xf32>
    %16 = arith.maximumf %14, %15 : vector<256x128xf32>
    %17 = arith.truncf %16 : vector<256x128xf32> to vector<256x128xbf16>
    %c0_12 = arith.constant 0 : index
    %c0_13 = arith.constant 0 : index
    %18 = vector.load %arg6[%c0_12, %c0_13] : memref<128x128xbf16, #tpu.memory_space<vmem>>, vector<128x128xbf16>
    %cst_14 = arith.constant dense<0.000000e+00> : vector<256x128xf32>
    %19 = tpu.matmul %17, %18, %cst_14 {dimension_numbers = #tpu.dot_dimension_numbers<[1], [0], [0], [1], [0, 0, 1, 1], [], []>} : vector<256x128xbf16>, vector<128x128xbf16>, vector<256x128xf32> -> vector<256x128xf32>
    %c0_15 = arith.constant 0 : index
    %c0_16 = arith.constant 0 : index
    %20 = vector.load %arg7[%c0_15, %c0_16] : memref<1x128xf32, #tpu.memory_space<vmem>>, vector<1x128xf32>
    %21 = vector.broadcast %20 : vector<1x128xf32> to vector<256x128xf32>
    %22 = arith.addf %19, %21 : vector<256x128xf32>
    %23 = arith.truncf %22 : vector<256x128xf32> to vector<256x128xbf16>
    %c0_17 = arith.constant 0 : index
    %c0_18 = arith.constant 0 : index
    %24 = vector.load %arg8[%c0_17, %c0_18] : memref<256x128xbf16, #tpu.memory_space<vmem>>, vector<256x128xbf16>
    tpu.vector_store %arg8[%c0_17, %c0_18], %23 {strides = array<i32>} : memref<256x128xbf16, #tpu.memory_space<vmem>>, vector<256x128xbf16>,
    return
  }
  func.func @transform_0(%arg0: i32) -> (i32, i32) {
    %c0_i32 = arith.constant 0 : i32
    %c0_i32_0 = arith.constant 0 : i32
    return %arg0, %c0_i32 : i32, i32
  }
  func.func @transform_1(%arg0: i32) -> (i32, i32) {
    %c0_i32 = arith.constant 0 : i32
    %c0_i32_0 = arith.constant 0 : i32
    %c0_i32_1 = arith.constant 0 : i32
    return %c0_i32, %c0_i32_0 : i32, i32
  }
  func.func @transform_2(%arg0: i32) -> (i32, i32) {
    %c0_i32 = arith.constant 0 : i32
    %c0_i32_0 = arith.constant 0 : i32
    %c0_i32_1 = arith.constant 0 : i32
    return %c0_i32, %c0_i32_0 : i32, i32
  }
  func.func @transform_3(%arg0: i32) -> (i32, i32) {
    %c0_i32 = arith.constant 0 : i32
    %c0_i32_0 = arith.constant 0 : i32
    %c0_i32_1 = arith.constant 0 : i32
    return %c0_i32, %c0_i32_0 : i32, i32
  }
  func.func @transform_4(%arg0: i32) -> (i32, i32) {
    %c0_i32 = arith.constant 0 : i32
    %c0_i32_0 = arith.constant 0 : i32
    %c0_i32_1 = arith.constant 0 : i32
    return %c0_i32, %c0_i32_0 : i32, i32
  }
  func.func @transform_5(%arg0: i32) -> (i32, i32) {
    %c0_i32 = arith.constant 0 : i32
    %c0_i32_0 = arith.constant 0 : i32
    %c0_i32_1 = arith.constant 0 : i32
    return %c0_i32, %c0_i32_0 : i32, i32
  }
  func.func @transform_6(%arg0: i32) -> (i32, i32) {
    %c0_i32 = arith.constant 0 : i32
    %c0_i32_0 = arith.constant 0 : i32
    %c0_i32_1 = arith.constant 0 : i32
    return %c0_i32, %c0_i32_0 : i32, i32
  }
  func.func @transform_7(%arg0: i32) -> (i32, i32) {
    %c0_i32 = arith.constant 0 : i32
    %c0_i32_0 = arith.constant 0 : i32
    return %arg0, %c0_i32 : i32, i32
  }
}

</mosaic_0001>

<llo_original>
// kernel: actor_forward.1
$region0: #{actor_forward.1}
  #allocation0 [shape = 'u32[]', space=smem, size = 0x4, offset = 0x4, fixed_abs, tag = 'smem constant byte address 0x4 - core index']
  #allocation1 [shape = 'u32[144,128]{1,0:T(1,128)}', space=vmem, size = 0x12000, scoped, tag = 'internal scratch']
  %s0 = inlined_call_operand.vmem [shape: f32[512,10], index: 0, kind: input, shape index: {}]
  %s1 = inlined_call_operand.vmem [shape: bf16[10,128], index: 1, kind: input, shape index: {}]
  %s2 = inlined_call_operand.vmem [shape: f32[1,128], index: 2, kind: input, shape index: {}]
  %s3 = inlined_call_operand.vmem [shape: bf16[128,128], index: 3, kind: input, shape index: {}]
  %s4 = inlined_call_operand.vmem [shape: f32[1,128], index: 4, kind: input, shape index: {}]
  %s5 = inlined_call_operand.vmem [shape: bf16[128,128], index: 5, kind: input, shape index: {}]
  %s6 = inlined_call_operand.vmem [shape: f32[1,128], index: 6, kind: input, shape index: {}]
  %s7 = inlined_call_operand.vmem [shape: bf16[512,128], index: 7, kind: output, shape index: {}]
  %s8 = sld [smem:[#allocation0]]
  $region61: #{actor_forward.1} parent=0
    _
  %s10 = ssub.s32 1, %s8
  %s11 = scalar_select 0, %s10, %s8
  loop: start=0, step=1, limit=4
  $region2: #{actor_forward.1} parent=0 // loop_pre_header
    _
  $region3: #{actor_forward.1} parent=0 // loop_header
    %s13 = sphi 0, %s17
    %p14 = scmp.ge.s32.totalorder %s13, 4
    %s23 = sphi 0, %s25
    %s26 = sphi 0, %s23
    %s27 = sphi 0, %s26
    %s43 = sphi 0, %s27
    %s47 = sphi 0, %s47
    %s49 = sphi 0, %s47
    %s50 = sphi 0, %s49
    %s64 = sphi 0, %s50
    %s68 = sphi 0, %s68
    %s70 = sphi 0, %s68
    %s71 = sphi 0, %s70
    %s85 = sphi 0, %s71
    %s89 = sphi 0, %s89
    %s91 = sphi 0, %s89
    %s92 = sphi 0, %s91
    %s106 = sphi 0, %s92
    %s110 = sphi 0, %s110
    %s112 = sphi 0, %s110
    %s113 = sphi 0, %s112
    %s127 = sphi 0, %s113
    %s131 = sphi 0, %s131
    %s133 = sphi 0, %s131
    %s134 = sphi 0, %s133
    %s148 = sphi 0, %s134
    %s152 = sphi 0, %s152
    %s154 = sphi 0, %s152
    %s155 = sphi 0, %s154
    %s169 = sphi 0, %s155
    %s175 = sphi 0, %s177
    %s178 = sphi 0, %s175
    %s179 = sphi 0, %s178
    %s195 = sphi 0, %s179
  $region4: #{actor_forward.1} parent=0 // loop_header_branch
    %16 = sbr.rel (%p14) target = $region8
  $region5: #{actor_forward.1} parent=0 // loop_body
    %s18 = ssub.s32 %s13, 1
    %s19 = ssub.s32 %s13, 2
    %s20 = sadd.s32 %s13, 1
    %s21 = ssub.s32 %s13, %s20
    %p22 = scmp.eq.s32.totalorder %s21, 0
    %s24 = sadd.s32 %s23, 1
    %s25 = scalar_select %p22, %s23, %s24
    %p28 = pneg %p22
    %p29 = scmp.eq.s32.totalorder %s13, 1
    %p30 = por %p28, %p29
    %p31 = scmp.ne.s32.totalorder %s23, %s26
    %p32 = scmp.eq.s32.totalorder %s13, 0
    %p33 = por %p31, %p32
    %p34 = scmp.ne.s32.totalorder %s23, %s26
    %p35 = scmp.eq.s32.totalorder %s18, 1
    %p36 = por %p34, %p35
    %p37 = scmp.ne.s32.totalorder %s26, %s27
    %p38 = scmp.eq.s32.totalorder %s18, 0
    %p39 = por %p37, %p38
    %p40 = scmp.ne.s32.totalorder %s26, %s27
    %p41 = scmp.eq.s32.totalorder %s19, 1
    %p42 = por %p40, %p41
    %p44 = scmp.ne.s32.totalorder %s27, %s43
    %p45 = scmp.eq.s32.totalorder %s19, 0
    %p46 = por %p44, %p45
    %s48 = sadd.s32 %s47, 1
    %p51 = scmp.eq.s32.totalorder %s13, 1
    %p52 = scmp.ne.s32.totalorder %s47, %s49
    %p53 = scmp.eq.s32.totalorder %s13, 0
    %p54 = por %p52, %p53
    %p55 = scmp.ne.s32.totalorder %s47, %s49
    %p56 = scmp.eq.s32.totalorder %s18, 1
    %p57 = por %p55, %p56
    %p58 = scmp.ne.s32.totalorder %s49, %s50
    %p59 = scmp.eq.s32.totalorder %s18, 0
    %p60 = por %p58, %p59
    %p61 = scmp.ne.s32.totalorder %s49, %s50
    %p62 = scmp.eq.s32.totalorder %s19, 1
    %p63 = por %p61, %p62
    %p65 = scmp.ne.s32.totalorder %s50, %s64
    %p66 = scmp.eq.s32.totalorder %s19, 0
    %p67 = por %p65, %p66
    %s69 = sadd.s32 %s68, 1
    %p72 = scmp.eq.s32.totalorder %s13, 1
    %p73 = scmp.ne.s32.totalorder %s68, %s70
    %p74 = scmp.eq.s32.totalorder %s13, 0
    %p75 = por %p73, %p74
    %p76 = scmp.ne.s32.totalorder %s68, %s70
    %p77 = scmp.eq.s32.totalorder %s18, 1
    %p78 = por %p76, %p77
    %p79 = scmp.ne.s32.totalorder %s70, %s71
    %p80 = scmp.eq.s32.totalorder %s18, 0
    %p81 = por %p79, %p80
    %p82 = scmp.ne.s32.totalorder %s70, %s71
    %p83 = scmp.eq.s32.totalorder %s19, 1
    %p84 = por %p82, %p83
    %p86 = scmp.ne.s32.totalorder %s71, %s85
    %p87 = scmp.eq.s32.totalorder %s19, 0
    %p88 = por %p86, %p87
    %s90 = sadd.s32 %s89, 1
    %p93 = scmp.eq.s32.totalorder %s13, 1
    %p94 = scmp.ne.s32.totalorder %s89, %s91
    %p95 = scmp.eq.s32.totalorder %s13, 0
    %p96 = por %p94, %p95
    %p97 = scmp.ne.s32.totalorder %s89, %s91
    %p98 = scmp.eq.s32.totalorder %s18, 1
    %p99 = por %p97, %p98
    %p100 = scmp.ne.s32.totalorder %s91, %s92
    %p101 = scmp.eq.s32.totalorder %s18, 0
    %p102 = por %p100, %p101
    %p103 = scmp.ne.s32.totalorder %s91, %s92
    %p104 = scmp.eq.s32.totalorder %s19, 1
    %p105 = por %p103, %p104
    %p107 = scmp.ne.s32.totalorder %s92, %s106
    %p108 = scmp.eq.s32.totalorder %s19, 0
    %p109 = por %p107, %p108
    %s111 = sadd.s32 %s110, 1
    %p114 = scmp.eq.s32.totalorder %s13, 1
    %p115 = scmp.ne.s32.totalorder %s110, %s112
    %p116 = scmp.eq.s32.totalorder %s13, 0
    %p117 = por %p115, %p116
    %p118 = scmp.ne.s32.totalorder %s110, %s112
    %p119 = scmp.eq.s32.totalorder %s18, 1
    %p120 = por %p118, %p119
    %p121 = scmp.ne.s32.totalorder %s112, %s113
    %p122 = scmp.eq.s32.totalorder %s18, 0
    %p123 = por %p121, %p122
    %p124 = scmp.ne.s32.totalorder %s112, %s113
    %p125 = scmp.eq.s32.totalorder %s19, 1
    %p126 = por %p124, %p125
    %p128 = scmp.ne.s32.totalorder %s113, %s127
    %p129 = scmp.eq.s32.totalorder %s19, 0
    %p130 = por %p128, %p129
    %s132 = sadd.s32 %s131, 1
    %p135 = scmp.eq.s32.totalorder %s13, 1
    %p136 = scmp.ne.s32.totalorder %s131, %s133
    %p137 = scmp.eq.s32.totalorder %s13, 0
    %p138 = por %p136, %p137
    %p139 = scmp.ne.s32.totalorder %s131, %s133
    %p140 = scmp.eq.s32.totalorder %s18, 1
    %p141 = por %p139, %p140
    %p142 = scmp.ne.s32.totalorder %s133, %s134
    %p143 = scmp.eq.s32.totalorder %s18, 0
    %p144 = por %p142, %p143
    %p145 = scmp.ne.s32.totalorder %s133, %s134
    %p146 = scmp.eq.s32.totalorder %s19, 1
    %p147 = por %p145, %p146
    %p149 = scmp.ne.s32.totalorder %s134, %s148
    %p150 = scmp.eq.s32.totalorder %s19, 0
    %p151 = por %p149, %p150
    %s153 = sadd.s32 %s152, 1
    %p156 = scmp.eq.s32.totalorder %s13, 1
    %p157 = scmp.ne.s32.totalorder %s152, %s154
    %p158 = scmp.eq.s32.totalorder %s13, 0
    %p159 = por %p157, %p158
    %p160 = scmp.ne.s32.totalorder %s152, %s154
    %p161 = scmp.eq.s32.totalorder %s18, 1
    %p162 = por %p160, %p161
    %p163 = scmp.ne.s32.totalorder %s154, %s155
    %p164 = scmp.eq.s32.totalorder %s18, 0
    %p165 = por %p163, %p164
    %p166 = scmp.ne.s32.totalorder %s154, %s155
    %p167 = scmp.eq.s32.totalorder %s19, 1
    %p168 = por %p166, %p167
    %p170 = scmp.ne.s32.totalorder %s155, %s169
    %p171 = scmp.eq.s32.totalorder %s19, 0
    %p172 = por %p170, %p171
    %s173 = ssub.s32 %s13, %s20
    %p174 = scmp.eq.s32.totalorder %s173, 0
    %s176 = sadd.s32 %s175, 1
    %s177 = scalar_select %p174, %s175, %s176
    %p180 = pneg %p174
    %p181 = scmp.eq.s32.totalorder %s13, 1
    %p182 = por %p180, %p181
    %p183 = scmp.ne.s32.totalorder %s175, %s178
    %p184 = scmp.eq.s32.totalorder %s13, 0
    %p185 = por %p183, %p184
    %p186 = scmp.ne.s32.totalorder %s175, %s178
    %p187 = scmp.eq.s32.totalorder %s18, 1
    %p188 = por %p186, %p187
    %p189 = scmp.ne.s32.totalorder %s178, %s179
    %p190 = scmp.eq.s32.totalorder %s18, 0
    %p191 = por %p189, %p190
    %p192 = scmp.ne.s32.totalorder %s178, %s179
    %p193 = scmp.eq.s32.totalorder %s19, 1
    %p194 = por %p192, %p193
    %p196 = scmp.ne.s32.totalorder %s179, %s195
    %p197 = scmp.eq.s32.totalorder %s19, 0
    %p198 = por %p196, %p197
    %p199 = scmp.le.s32.totalorder 1, %s13
    %p200 = scmp.lt.s32.totalorder %s13, 3
    %p201 = pnand %p199, %p200
    %p202 = pneg %p201
    // Predicated region
    $region9: #{actor_forward.1} parent=5 // pred_check
      _
    $region10: #{actor_forward.1} parent=5 // pred_check_branch
      %204 = sbr.rel (%p201) target = $region12
    $region11: #{actor_forward.1} parent=5 // pred_region
      %s205 = ssub.s32 %s13, 1
      // Predicated region
      $region13: #{actor_forward.1} parent=11 // pred_check
        %p206 = pneg %p60
      $region14: #{actor_forward.1} parent=11 // pred_check_branch
        %208 = sbr.rel (%p206) target = $region16
      $region15: #{actor_forward.1} parent=11 // pred_region
        _
      $region16: #{actor_forward.1} parent=11 // pred_fallthru
        _
      // Predicated region
      $region17: #{actor_forward.1} parent=11 // pred_check
        %p209 = pneg %p81
      $region18: #{actor_forward.1} parent=11 // pred_check_branch
        %211 = sbr.rel (%p209) target = $region20
      $region19: #{actor_forward.1} parent=11 // pred_region
        _
      $region20: #{actor_forward.1} parent=11 // pred_fallthru
        _
      // Predicated region
      $region21: #{actor_forward.1} parent=11 // pred_check
        %p212 = pneg %p102
      $region22: #{actor_forward.1} parent=11 // pred_check_branch
        %214 = sbr.rel (%p212) target = $region24
      $region23: #{actor_forward.1} parent=11 // pred_region
        _
      $region24: #{actor_forward.1} parent=11 // pred_fallthru
        _
      // Predicated region
      $region25: #{actor_forward.1} parent=11 // pred_check
        %p215 = pneg %p123
      $region26: #{actor_forward.1} parent=11 // pred_check_branch
        %217 = sbr.rel (%p215) target = $region28
      $region27: #{actor_forward.1} parent=11 // pred_region
        _
      $region28: #{actor_forward.1} parent=11 // pred_fallthru
        _
      // Predicated region
      $region29: #{actor_forward.1} parent=11 // pred_check
        %p218 = pneg %p144
      $region30: #{actor_forward.1} parent=11 // pred_check_branch
        %220 = sbr.rel (%p218) target = $region32
      $region31: #{actor_forward.1} parent=11 // pred_region
        _
      $region32: #{actor_forward.1} parent=11 // pred_fallthru
        _
      // Predicated region
      $region33: #{actor_forward.1} parent=11 // pred_check
        %p221 = pneg %p165
      $region34: #{actor_forward.1} parent=11 // pred_check_branch
        %223 = sbr.rel (%p221) target = $region36
      $region35: #{actor_forward.1} parent=11 // pred_region
        _
      $region36: #{actor_forward.1} parent=11 // pred_fallthru
        _
    $region12: #{actor_forward.1} parent=5 // pred_fallthru
      _
    %p224 = scmp.lt.s32.totalorder %s13, 2
    // Predicated region
    $region37: #{actor_forward.1} parent=5 // pred_check
      %p225 = pneg %p224
    $region38: #{actor_forward.1} parent=5 // pred_check_branch
      %227 = sbr.rel (%p225) target = $region40
    $region39: #{actor_forward.1} parent=5 // pred_region
      // Predicated region
      $region41: #{actor_forward.1} parent=39 // pred_check
        %p228 = pneg %p33
      $region42: #{actor_forward.1} parent=39 // pred_check_branch
        %230 = sbr.rel (%p228) target = $region44
      $region43: #{actor_forward.1} parent=39 // pred_region
        %s231 = smul.u32 32, %s13
        %p232 = scmp.lt.s32.totalorder %s231, 63
        %s233 = scalar_select %p232, %s231, 63
        %s234 = smul.addr %s233, 8
        %s235 = scalar_lea.vmem %s0, %s234
        %s236 = smul.u32 32, %s13
      $region44: #{actor_forward.1} parent=39 // pred_fallthru
        _
    $region40: #{actor_forward.1} parent=5 // pred_fallthru
      _
    %p237 = scmp.le.s32.totalorder 1, %s13
    %p238 = scmp.lt.s32.totalorder %s13, 3
    %p239 = pnand %p237, %p238
    %p240 = pneg %p239
    // Predicated region
    $region45: #{actor_forward.1} parent=5 // pred_check
      _
    $region46: #{actor_forward.1} parent=5 // pred_check_branch
      %242 = sbr.rel (%p239) target = $region48
    $region47: #{actor_forward.1} parent=5 // pred_region
      %s243 = ssub.s32 %s13, 1
      %s244 = smul.u32 32, %s18
      %p245 = scmp.lt.s32.totalorder %s244, 63
      %s246 = scalar_select %p245, %s244, 63
      %s247 = smul.addr %s246, 8
      %s248 = scalar_lea.vmem %s0, %s247
      %p249 = pneg %p39
      %p250 = pneg %p36
      %p251 = pneg %p60
      %p252 = pneg %p57
      %p253 = pneg %p81
      %p254 = pneg %p78
      %p255 = pneg %p102
      %p256 = pneg %p99
      %p257 = pneg %p123
      %p258 = pneg %p120
      %p259 = pneg %p144
      %p260 = pneg %p141
      %p261 = pneg %p165
      %p262 = pneg %p162
      %p263 = pneg %p191
      %p264 = pneg %p188
      %s265 = smul.u32 32, %s18
      %p266 = scmp.lt.s32.totalorder %s265, 63
      %s267 = scalar_select %p266, %s265, 63
      %s268 = smul.addr %s267, 4
      %s269 = scalar_lea.vmem %s7, %s268
      %s270 = smul.u32 32, %s18
      %p271 = scmp.lt.s32.totalorder %s270, 63
      %s272 = scalar_select %p271, %s270, 63
      %s273 = smul.addr %s272, 8
      %s274 = scalar_lea.vmem %s0, %s273
      %s275 = smul.u32 32, %s18
      %s276 = smul.u32 32, %s18
      %p277 = scmp.lt.s32.totalorder %s276, 63
      %s278 = scalar_select %p277, %s276, 63
      %s279 = smul.addr %s278, 4
      %s280 = scalar_lea.vmem %s7, %s279
      %s281 = smul.u32 32, %s18
      %v283 = vld [vmem:[%s274] sm:$0xff]
      %v284 = vld [vmem:[%s274 + $0x8] sm:$0xff]
      %v285 = vld [vmem:[%s274 + $0x10] sm:$0xff]
      %v286 = vld [vmem:[%s274 + $0x18] sm:$0xff]
      %v287 = vld [vmem:[%s274 + $0x20] sm:$0xff]
      %v288 = vld [vmem:[%s274 + $0x28] sm:$0xff]
      %v289 = vld [vmem:[%s274 + $0x30] sm:$0xff]
      %v290 = vld [vmem:[%s274 + $0x38] sm:$0xff]
      %v291 = vld [vmem:[%s274 + $0x40] sm:$0xff]
      %v292 = vld [vmem:[%s274 + $0x48] sm:$0xff]
      %v293 = vld [vmem:[%s274 + $0x50] sm:$0xff]
      %v294 = vld [vmem:[%s274 + $0x58] sm:$0xff]
      %v295 = vld [vmem:[%s274 + $0x60] sm:$0xff]
      %v296 = vld [vmem:[%s274 + $0x68] sm:$0xff]
      %v297 = vld [vmem:[%s274 + $0x70] sm:$0xff]
      %v298 = vld [vmem:[%s274 + $0x78] sm:$0xff]
      %v299 = vld [vmem:[%s274 + $0x80] sm:$0xff]
      %v300 = vld [vmem:[%s274 + $0x88] sm:$0xff]
      %v301 = vld [vmem:[%s274 + $0x90] sm:$0xff]
      %v302 = vld [vmem:[%s274 + $0x98] sm:$0xff]
      %v303 = vld [vmem:[%s274 + $0xa0] sm:$0xff]
      %v304 = vld [vmem:[%s274 + $0xa8] sm:$0xff]
      %v305 = vld [vmem:[%s274 + $0xb0] sm:$0xff]
      %v306 = vld [vmem:[%s274 + $0xb8] sm:$0xff]
      %v307 = vld [vmem:[%s274 + $0xc0] sm:$0xff]
      %v308 = vld [vmem:[%s274 + $0xc8] sm:$0xff]
      %v309 = vld [vmem:[%s274 + $0xd0] sm:$0xff]
      %v310 = vld [vmem:[%s274 + $0xd8] sm:$0xff]
      %v311 = vld [vmem:[%s274 + $0xe0] sm:$0xff]
      %v312 = vld [vmem:[%s274 + $0xe8] sm:$0xff]
      %v313 = vld [vmem:[%s274 + $0xf0] sm:$0xff]
      %v314 = vld [vmem:[%s274 + $0xf8] sm:$0xff]
      %v315 = vpack.c.bf16 %v284, %v283
      %v316 = vpack.c.bf16 %v286, %v285
      %v317 = vpack.c.bf16 %v288, %v287
      %v318 = vpack.c.bf16 %v290, %v289
      %v319 = vpack.c.bf16 %v292, %v291
      %v320 = vpack.c.bf16 %v294, %v293
      %v321 = vpack.c.bf16 %v296, %v295
      %v322 = vpack.c.bf16 %v298, %v297
      %v323 = vpack.c.bf16 %v300, %v299
      %v324 = vpack.c.bf16 %v302, %v301
      %v325 = vpack.c.bf16 %v304, %v303
      %v326 = vpack.c.bf16 %v306, %v305
      %v327 = vpack.c.bf16 %v308, %v307
      %v328 = vpack.c.bf16 %v310, %v309
      %v329 = vpack.c.bf16 %v312, %v311
      %v330 = vpack.c.bf16 %v314, %v313
      %v331 = vld [vmem:[%s1] sm:$0xf]
      %v332 = vld [vmem:[%s1 + $0x4] sm:$0x1]
      %v333 = vld [vmem:[%s2] sm:$0x1]
      %v335 = vlaneseq
      %v336 = vshrl.u32 %v335, 7
      %v337 = vsub.s32 0, %v336
      %v338 = vrot.slane %v333, %v337
      %v342 = vunpack.c.l.b16 %v331
      %v343 = vunpack.c.l.b16 %v332
      %v344 = vpack.c.b16 %v343, %v342
      %vm345 = vcmask 80896
      %v347 = vsel %vm345, %v315, 0
      %v350 = vsel %vm345, %v316, 0
      %v353 = vsel %vm345, %v317, 0
      %v356 = vsel %vm345, %v318, 0
      %v359 = vsel %vm345, %v319, 0
      %v362 = vsel %vm345, %v320, 0
      %v365 = vsel %vm345, %v321, 0
      %v368 = vsel %vm345, %v322, 0
      %v371 = vsel %vm345, %v323, 0
      %v374 = vsel %vm345, %v324, 0
      %v377 = vsel %vm345, %v325, 0
      %v380 = vsel %vm345, %v326, 0
      %v383 = vsel %vm345, %v327, 0
      %v386 = vsel %vm345, %v328, 0
      %v389 = vsel %vm345, %v329, 0
      %v392 = vsel %vm345, %v330, 0
      %vm394 = vcmask 1044480
      %v396 = vsel %vm394, %v344, 0
      %398 = vmatprep.subr.bf16.mxu0 0
      %399 = vmatpush1.bf16.msra.mxu0 %v396
      %400 = vmatprep.subr.bf16.mxu0 0
      %401 = vmatpush1.bf16.msra.mxu0 0
      %402 = vmatprep.subr.bf16.mxu0 0
      %403 = vmatpush1.bf16.msra.mxu0 0
      %404 = vmatprep.subr.bf16.mxu0 0
      %405 = vmatpush1.bf16.msra.mxu0 0
      %406 = vmatprep.subr.bf16.mxu0 0
      %407 = vmatpush1.bf16.msra.mxu0 0
      %408 = vmatprep.subr.bf16.mxu0 0
      %409 = vmatpush1.bf16.msra.mxu0 0
      %410 = vmatprep.subr.bf16.mxu0 0
      %411 = vmatpush1.bf16.msra.mxu0 0
      %412 = vmatprep.subr.bf16.mxu0 0
      %413 = vmatpush1.bf16.msra.mxu0 0
      %414 = vmatprep.subr.bf16.mxu0 0
      %415 = vmatpush1.bf16.msra.mxu0 0
      %416 = vmatprep.subr.bf16.mxu0 0
      %417 = vmatpush1.bf16.msra.mxu0 0
      %418 = vmatprep.subr.bf16.mxu0 0
      %419 = vmatpush1.bf16.msra.mxu0 0
      %420 = vmatprep.subr.bf16.mxu0 0
      %421 = vmatpush1.bf16.msra.mxu0 0
      %422 = vmatprep.subr.bf16.mxu0 0
      %423 = vmatpush1.bf16.msra.mxu0 0
      %424 = vmatprep.subr.bf16.mxu0 0
      %425 = vmatpush1.bf16.msra.mxu0 0
      %426 = vmatprep.subr.bf16.mxu0 0
      %427 = vmatpush1.bf16.msra.mxu0 0
      %428 = vmatprep.subr.bf16.mxu0 0
      %429 = vmatpush1.bf16.msra.mxu0 0
      %430 = vmatprep.mubr.bf16.mxu0 0
      %431 = vmatmul.mubr.bf16.gmra.mrb[0].mxu0 %v347
      %v432 = vpop.f32.mrb[0].mxu0
      %v433 = vadd.f32 %v338, %v432
      %v434 = vpop.f32.mrb[0].mxu0
      %v435 = vpop.f32.mrb[0].mxu0
      %v436 = vadd.f32 %v338, %v435
      %v437 = vpop.f32.mrb[0].mxu0
      %438 = vmatprep.mubr.bf16.mxu0 0
      %439 = vmatmul.mubr.bf16.gmra.mrb[0].mxu0 %v350
      %v440 = vpop.f32.mrb[0].mxu0
      %v441 = vadd.f32 %v338, %v440
      %v442 = vpop.f32.mrb[0].mxu0
      %v443 = vpop.f32.mrb[0].mxu0
      %v444 = vadd.f32 %v338, %v443
      %v445 = vpop.f32.mrb[0].mxu0
      %446 = vmatprep.mubr.bf16.mxu0 0
      %447 = vmatmul.mubr.bf16.gmra.mrb[0].mxu0 %v353
      %v448 = vpop.f32.mrb[0].mxu0
      %v449 = vadd.f32 %v338, %v448
      %v450 = vpop.f32.mrb[0].mxu0
      %v451 = vpop.f32.mrb[0].mxu0
      %v452 = vadd.f32 %v338, %v451
      %v453 = vpop.f32.mrb[0].mxu0
      %454 = vmatprep.mubr.bf16.mxu0 0
      %455 = vmatmul.mubr.bf16.gmra.mrb[0].mxu0 %v356
      %v456 = vpop.f32.mrb[0].mxu0
      %v457 = vadd.f32 %v338, %v456
      %v458 = vpop.f32.mrb[0].mxu0
      %v459 = vpop.f32.mrb[0].mxu0
      %v460 = vadd.f32 %v338, %v459
      %v461 = vpop.f32.mrb[0].mxu0
      %462 = vmatprep.mubr.bf16.mxu0 0
      %463 = vmatmul.mubr.bf16.gmra.mrb[0].mxu0 %v359
      %v464 = vpop.f32.mrb[0].mxu0
      %v465 = vadd.f32 %v338, %v464
      %v466 = vpop.f32.mrb[0].mxu0
      %v467 = vpop.f32.mrb[0].mxu0
      %v468 = vadd.f32 %v338, %v467
      %v469 = vpop.f32.mrb[0].mxu0
      %470 = vmatprep.mubr.bf16.mxu0 0
      %471 = vmatmul.mubr.bf16.gmra.mrb[0].mxu0 %v362
      %v472 = vpop.f32.mrb[0].mxu0
      %v473 = vadd.f32 %v338, %v472
      %v474 = vpop.f32.mrb[0].mxu0
      %v475 = vpop.f32.mrb[0].mxu0
      %v476 = vadd.f32 %v338, %v475
      %v477 = vpop.f32.mrb[0].mxu0
      %478 = vmatprep.mubr.bf16.mxu0 0
      %479 = vmatmul.mubr.bf16.gmra.mrb[0].mxu0 %v365
      %v480 = vpop.f32.mrb[0].mxu0
      %v481 = vadd.f32 %v338, %v480
      %v482 = vpop.f32.mrb[0].mxu0
      %v483 = vpop.f32.mrb[0].mxu0
      %v484 = vadd.f32 %v338, %v483
      %v485 = vpop.f32.mrb[0].mxu0
      %486 = vmatprep.mubr.bf16.mxu0 0
      %487 = vmatmul.mubr.bf16.gmra.mrb[0].mxu0 %v368
      %v488 = vpop.f32.mrb[0].mxu0
      %v489 = vadd.f32 %v338, %v488
      %v490 = vpop.f32.mrb[0].mxu0
      %v491 = vpop.f32.mrb[0].mxu0
      %v492 = vadd.f32 %v338, %v491
      %v493 = vpop.f32.mrb[0].mxu0
      %494 = vmatprep.mubr.bf16.mxu0 0
      %495 = vmatmul.mubr.bf16.gmra.mrb[0].mxu0 %v371
      %v496 = vpop.f32.mrb[0].mxu0
      %v497 = vadd.f32 %v338, %v496
      %v498 = vpop.f32.mrb[0].mxu0
      %v499 = vpop.f32.mrb[0].mxu0
      %v500 = vadd.f32 %v338, %v499
      %v501 = vpop.f32.mrb[0].mxu0
      %502 = vmatprep.mubr.bf16.mxu0 0
      %503 = vmatmul.mubr.bf16.gmra.mrb[0].mxu0 %v374
      %v504 = vpop.f32.mrb[0].mxu0
      %v505 = vadd.f32 %v338, %v504
      %v506 = vpop.f32.mrb[0].mxu0
      %v507 = vpop.f32.mrb[0].mxu0
      %v508 = vadd.f32 %v338, %v507
      %v509 = vpop.f32.mrb[0].mxu0
      %510 = vmatprep.mubr.bf16.mxu0 0
      %511 = vmatmul.mubr.bf16.gmra.mrb[0].mxu0 %v377
      %v512 = vpop.f32.mrb[0].mxu0
      %v513 = vadd.f32 %v338, %v512
      %v514 = vpop.f32.mrb[0].mxu0
      %v515 = vpop.f32.mrb[0].mxu0
      %v516 = vadd.f32 %v338, %v515
      %v517 = vpop.f32.mrb[0].mxu0
      %518 = vmatprep.mubr.bf16.mxu0 0
      %519 = vmatmul.mubr.bf16.gmra.mrb[0].mxu0 %v380
      %v520 = vpop.f32.mrb[0].mxu0
      %v521 = vadd.f32 %v338, %v520
      %v522 = vpop.f32.mrb[0].mxu0
      %v523 = vpop.f32.mrb[0].mxu0
      %v524 = vadd.f32 %v338, %v523
      %v525 = vpop.f32.mrb[0].mxu0
      %526 = vmatprep.mubr.bf16.mxu0 0
      %527 = vmatmul.mubr.bf16.gmra.mrb[0].mxu0 %v383
      %v528 = vpop.f32.mrb[0].mxu0
      %v529 = vadd.f32 %v338, %v528
      %v530 = vpop.f32.mrb[0].mxu0
      %v531 = vpop.f32.mrb[0].mxu0
      %v532 = vadd.f32 %v338, %v531
      %v533 = vpop.f32.mrb[0].mxu0
      %534 = vmatprep.mubr.bf16.mxu0 0
      %535 = vmatmul.mubr.bf16.gmra.mrb[0].mxu0 %v386
      %v536 = vpop.f32.mrb[0].mxu0
      %v537 = vadd.f32 %v338, %v536
      %v538 = vpop.f32.mrb[0].mxu0
      %v539 = vpop.f32.mrb[0].mxu0
      %v540 = vadd.f32 %v338, %v539
      %v541 = vpop.f32.mrb[0].mxu0
      %542 = vmatprep.mubr.bf16.mxu0 0
      %543 = vmatmul.mubr.bf16.gmra.mrb[0].mxu0 %v389
      %v544 = vpop.f32.mrb[0].mxu0
      %v545 = vadd.f32 %v338, %v544
      %v546 = vpop.f32.mrb[0].mxu0
      %v547 = vpop.f32.mrb[0].mxu0
      %v548 = vadd.f32 %v338, %v547
      %v549 = vpop.f32.mrb[0].mxu0
      %550 = vmatprep.mubr.bf16.mxu0 0
      %551 = vmatmul.mubr.bf16.gmra.mrb[0].mxu0 %v392
      %v552 = vpop.f32.mrb[0].mxu0
      %v553 = vadd.f32 %v338, %v552
      %v554 = vpop.f32.mrb[0].mxu0
      %v555 = vpop.f32.mrb[0].mxu0
      %v556 = vadd.f32 %v338, %v555
      %v557 = vpop.f32.mrb[0].mxu0
      %558 = vdwg.mxu0
      %v559 = vmax.f32 %v433, 0.0
      %v560 = vmax.f32 %v436, 0.0
      %v561 = vmax.f32 %v441, 0.0
      %v562 = vmax.f32 %v444, 0.0
      %v563 = vmax.f32 %v449, 0.0
      %v564 = vmax.f32 %v452, 0.0
      %v565 = vmax.f32 %v457, 0.0
      %v566 = vmax.f32 %v460, 0.0
      %v567 = vmax.f32 %v465, 0.0
      %v568 = vmax.f32 %v468, 0.0
      %v569 = vmax.f32 %v473, 0.0
      %v570 = vmax.f32 %v476, 0.0
      %v571 = vmax.f32 %v481, 0.0
      %v572 = vmax.f32 %v484, 0.0
      %v573 = vmax.f32 %v489, 0.0
      %v574 = vmax.f32 %v492, 0.0
      %v575 = vmax.f32 %v497, 0.0
      %v576 = vmax.f32 %v500, 0.0
      %v577 = vmax.f32 %v505, 0.0
      %v578 = vmax.f32 %v508, 0.0
      %v579 = vmax.f32 %v513, 0.0
      %v580 = vmax.f32 %v516, 0.0
      %v581 = vmax.f32 %v521, 0.0
      %v582 = vmax.f32 %v524, 0.0
      %v583 = vmax.f32 %v529, 0.0
      %v584 = vmax.f32 %v532, 0.0
      %v585 = vmax.f32 %v537, 0.0
      %v586 = vmax.f32 %v540, 0.0
      %v587 = vmax.f32 %v545, 0.0
      %v588 = vmax.f32 %v548, 0.0
      %v589 = vmax.f32 %v553, 0.0
      %v590 = vmax.f32 %v556, 0.0
      %v591 = vpack.c.bf16 %v560, %v559
      %v592 = vpack.c.bf16 %v562, %v561
      %v593 = vpack.c.bf16 %v564, %v563
      %v594 = vpack.c.bf16 %v566, %v565
      %v595 = vpack.c.bf16 %v568, %v567
      %v596 = vpack.c.bf16 %v570, %v569
      %v597 = vpack.c.bf16 %v572, %v571
      %v598 = vpack.c.bf16 %v574, %v573
      %v599 = vpack.c.bf16 %v576, %v575
      %v600 = vpack.c.bf16 %v578, %v577
      %v601 = vpack.c.bf16 %v580, %v579
      %v602 = vpack.c.bf16 %v582, %v581
      %v603 = vpack.c.bf16 %v584, %v583
      %v604 = vpack.c.bf16 %v586, %v585
      %v605 = vpack.c.bf16 %v588, %v587
      %v606 = vpack.c.bf16 %v590, %v589
      %v607 = vld [vmem:[%s3] sm:$0xf]
      %v608 = vld [vmem:[%s3 + $0x4] sm:$0xf]
      %v609 = vld [vmem:[%s3 + $0x8] sm:$0xf]
      %v610 = vld [vmem:[%s3 + $0xc] sm:$0xf]
      %v611 = vld [vmem:[%s3 + $0x10] sm:$0xf]
      %v612 = vld [vmem:[%s3 + $0x14] sm:$0xf]
      %v613 = vld [vmem:[%s3 + $0x18] sm:$0xf]
      %v614 = vld [vmem:[%s3 + $0x1c] sm:$0xf]
      %v615 = vld [vmem:[%s3 + $0x20] sm:$0xf]
      %v616 = vld [vmem:[%s3 + $0x24] sm:$0xf]
      %v617 = vld [vmem:[%s3 + $0x28] sm:$0xf]
      %v618 = vld [vmem:[%s3 + $0x2c] sm:$0xf]
      %v619 = vld [vmem:[%s3 + $0x30] sm:$0xf]
      %v620 = vld [vmem:[%s3 + $0x34] sm:$0xf]
      %v621 = vld [vmem:[%s3 + $0x38] sm:$0xf]
      %v622 = vld [vmem:[%s3 + $0x3c] sm:$0xf]
      %v623 = vld [vmem:[%s4] sm:$0x1]
      %v625 = vlaneseq
      %v626 = vshrl.u32 %v625, 7
      %v627 = vsub.s32 0, %v626
      %v628 = vrot.slane %v623, %v627
      %v646 = vunpack.c.l.b16 %v607
      %v647 = vunpack.c.l.b16 %v608
      %v648 = vunpack.c.l.b16 %v609
      %v649 = vunpack.c.l.b16 %v610
      %v650 = vunpack.c.l.b16 %v611
      %v651 = vunpack.c.l.b16 %v612
      %v652 = vunpack.c.l.b16 %v613
      %v653 = vunpack.c.l.b16 %v614
      %v654 = vunpack.c.l.b16 %v615
      %v655 = vunpack.c.l.b16 %v616
      %v656 = vunpack.c.l.b16 %v617
      %v657 = vunpack.c.l.b16 %v618
      %v658 = vunpack.c.l.b16 %v619
      %v659 = vunpack.c.l.b16 %v620
      %v660 = vunpack.c.l.b16 %v621
      %v661 = vunpack.c.l.b16 %v622
      %v662 = vpack.c.b16 %v647, %v646
      %v663 = vpack.c.b16 %v649, %v648
      %v664 = vpack.c.b16 %v651, %v650
      %v665 = vpack.c.b16 %v653, %v652
      %v666 = vpack.c.b16 %v655, %v654
      %v667 = vpack.c.b16 %v657, %v656
      %v668 = vpack.c.b16 %v659, %v658
      %v669 = vpack.c.b16 %v661, %v660
      %678 = vmatprep.subr.bf16.mxu0 0
      %679 = vmatpush1.bf16.msra.mxu0 %v662
      %680 = vmatprep.subr.bf16.mxu0 0
      %681 = vmatpush1.bf16.msra.mxu0 %v663
      %682 = vmatprep.subr.bf16.mxu0 0
      %683 = vmatpush1.bf16.msra.mxu0 %v664
      %684 = vmatprep.subr.bf16.mxu0 0
      %685 = vmatpush1.bf16.msra.mxu0 %v665
      %686 = vmatprep.subr.bf16.mxu0 0
      %687 = vmatpush1.bf16.msra.mxu0 %v666
      %688 = vmatprep.subr.bf16.mxu0 0
      %689 = vmatpush1.bf16.msra.mxu0 %v667
      %690 = vmatprep.subr.bf16.mxu0 0
      %691 = vmatpush1.bf16.msra.mxu0 %v668
      %692 = vmatprep.subr.bf16.mxu0 0
      %693 = vmatpush1.bf16.msra.mxu0 %v669
      %694 = vmatprep.subr.bf16.mxu0 0
      %695 = vmatpush1.bf16.msra.mxu0 0
      %696 = vmatprep.subr.bf16.mxu0 0
      %697 = vmatpush1.bf16.msra.mxu0 0
      %698 = vmatprep.subr.bf16.mxu0 0
      %699 = vmatpush1.bf16.msra.mxu0 0
      %700 = vmatprep.subr.bf16.mxu0 0
      %701 = vmatpush1.bf16.msra.mxu0 0
      %702 = vmatprep.subr.bf16.mxu0 0
      %703 = vmatpush1.bf16.msra.mxu0 0
      %704 = vmatprep.subr.bf16.mxu0 0
      %705 = vmatpush1.bf16.msra.mxu0 0
      %706 = vmatprep.subr.bf16.mxu0 0
      %707 = vmatpush1.bf16.msra.mxu0 0
      %708 = vmatprep.subr.bf16.mxu0 0
      %709 = vmatpush1.bf16.msra.mxu0 0
      %710 = vmatprep.mubr.bf16.mxu0 0
      %711 = vmatmul.mubr.bf16.gmra.mrb[0].mxu0 %v591
      %v712 = vpop.f32.mrb[0].mxu0
      %v713 = vadd.f32 %v628, %v712
      %v714 = vpop.f32.mrb[0].mxu0
      %v715 = vpop.f32.mrb[0].mxu0
      %v716 = vadd.f32 %v628, %v715
      %v717 = vpop.f32.mrb[0].mxu0
      %718 = vmatprep.mubr.bf16.mxu0 0
      %719 = vmatmul.mubr.bf16.gmra.mrb[0].mxu0 %v592
      %v720 = vpop.f32.mrb[0].mxu0
      %v721 = vadd.f32 %v628, %v720
      %v722 = vpop.f32.mrb[0].mxu0
      %v723 = vpop.f32.mrb[0].mxu0
      %v724 = vadd.f32 %v628, %v723
      %v725 = vpop.f32.mrb[0].mxu0
      %726 = vmatprep.mubr.bf16.mxu0 0
      %727 = vmatmul.mubr.bf16.gmra.mrb[0].mxu0 %v593
      %v728 = vpop.f32.mrb[0].mxu0
      %v729 = vadd.f32 %v628, %v728
      %v730 = vpop.f32.mrb[0].mxu0
      %v731 = vpop.f32.mrb[0].mxu0
      %v732 = vadd.f32 %v628, %v731
      %v733 = vpop.f32.mrb[0].mxu0
      %734 = vmatprep.mubr.bf16.mxu0 0
      %735 = vmatmul.mubr.bf16.gmra.mrb[0].mxu0 %v594
      %v736 = vpop.f32.mrb[0].mxu0
      %v737 = vadd.f32 %v628, %v736
      %v738 = vpop.f32.mrb[0].mxu0
      %v739 = vpop.f32.mrb[0].mxu0
      %v740 = vadd.f32 %v628, %v739
      %v741 = vpop.f32.mrb[0].mxu0
      %742 = vmatprep.mubr.bf16.mxu0 0
      %743 = vmatmul.mubr.bf16.gmra.mrb[0].mxu0 %v595
      %v744 = vpop.f32.mrb[0].mxu0
      %v745 = vadd.f32 %v628, %v744
      %v746 = vpop.f32.mrb[0].mxu0
      %v747 = vpop.f32.mrb[0].mxu0
      %v748 = vadd.f32 %v628, %v747
      %v749 = vpop.f32.mrb[0].mxu0
      %750 = vmatprep.mubr.bf16.mxu0 0
      %751 = vmatmul.mubr.bf16.gmra.mrb[0].mxu0 %v596
      %v752 = vpop.f32.mrb[0].mxu0
      %v753 = vadd.f32 %v628, %v752
      %v754 = vpop.f32.mrb[0].mxu0
      %v755 = vpop.f32.mrb[0].mxu0
      %v756 = vadd.f32 %v628, %v755
      %v757 = vpop.f32.mrb[0].mxu0
      %758 = vmatprep.mubr.bf16.mxu0 0
      %759 = vmatmul.mubr.bf16.gmra.mrb[0].mxu0 %v597
      %v760 = vpop.f32.mrb[0].mxu0
      %v761 = vadd.f32 %v628, %v760
      %v762 = vpop.f32.mrb[0].mxu0
      %v763 = vpop.f32.mrb[0].mxu0
      %v764 = vadd.f32 %v628, %v763
      %v765 = vpop.f32.mrb[0].mxu0
      %766 = vmatprep.mubr.bf16.mxu0 0
      %767 = vmatmul.mubr.bf16.gmra.mrb[0].mxu0 %v598
      %v768 = vpop.f32.mrb[0].mxu0
      %v769 = vadd.f32 %v628, %v768
      %v770 = vpop.f32.mrb[0].mxu0
      %v771 = vpop.f32.mrb[0].mxu0
      %v772 = vadd.f32 %v628, %v771
      %v773 = vpop.f32.mrb[0].mxu0
      %774 = vmatprep.mubr.bf16.mxu0 0
      %775 = vmatmul.mubr.bf16.gmra.mrb[0].mxu0 %v599
      %v776 = vpop.f32.mrb[0].mxu0
      %v777 = vadd.f32 %v628, %v776
      %v778 = vpop.f32.mrb[0].mxu0
      %v779 = vpop.f32.mrb[0].mxu0
      %v780 = vadd.f32 %v628, %v779
      %v781 = vpop.f32.mrb[0].mxu0
      %782 = vmatprep.mubr.bf16.mxu0 0
      %783 = vmatmul.mubr.bf16.gmra.mrb[0].mxu0 %v600
      %v784 = vpop.f32.mrb[0].mxu0
      %v785 = vadd.f32 %v628, %v784
      %v786 = vpop.f32.mrb[0].mxu0
      %v787 = vpop.f32.mrb[0].mxu0
      %v788 = vadd.f32 %v628, %v787
      %v789 = vpop.f32.mrb[0].mxu0
      %790 = vmatprep.mubr.bf16.mxu0 0
      %791 = vmatmul.mubr.bf16.gmra.mrb[0].mxu0 %v601
      %v792 = vpop.f32.mrb[0].mxu0
      %v793 = vadd.f32 %v628, %v792
      %v794 = vpop.f32.mrb[0].mxu0
      %v795 = vpop.f32.mrb[0].mxu0
      %v796 = vadd.f32 %v628, %v795
      %v797 = vpop.f32.mrb[0].mxu0
      %798 = vmatprep.mubr.bf16.mxu0 0
      %799 = vmatmul.mubr.bf16.gmra.mrb[0].mxu0 %v602
      %v800 = vpop.f32.mrb[0].mxu0
      %v801 = vadd.f32 %v628, %v800
      %v802 = vpop.f32.mrb[0].mxu0
      %v803 = vpop.f32.mrb[0].mxu0
      %v804 = vadd.f32 %v628, %v803
      %v805 = vpop.f32.mrb[0].mxu0
      %806 = vmatprep.mubr.bf16.mxu0 0
      %807 = vmatmul.mubr.bf16.gmra.mrb[0].mxu0 %v603
      %v808 = vpop.f32.mrb[0].mxu0
      %v809 = vadd.f32 %v628, %v808
      %v810 = vpop.f32.mrb[0].mxu0
      %v811 = vpop.f32.mrb[0].mxu0
      %v812 = vadd.f32 %v628, %v811
      %v813 = vpop.f32.mrb[0].mxu0
      %814 = vmatprep.mubr.bf16.mxu0 0
      %815 = vmatmul.mubr.bf16.gmra.mrb[0].mxu0 %v604
      %v816 = vpop.f32.mrb[0].mxu0
      %v817 = vadd.f32 %v628, %v816
      %v818 = vpop.f32.mrb[0].mxu0
      %v819 = vpop.f32.mrb[0].mxu0
      %v820 = vadd.f32 %v628, %v819
      %v821 = vpop.f32.mrb[0].mxu0
      %822 = vmatprep.mubr.bf16.mxu0 0
      %823 = vmatmul.mubr.bf16.gmra.mrb[0].mxu0 %v605
      %v824 = vpop.f32.mrb[0].mxu0
      %v825 = vadd.f32 %v628, %v824
      %v826 = vpop.f32.mrb[0].mxu0
      %v827 = vpop.f32.mrb[0].mxu0
      %v828 = vadd.f32 %v628, %v827
      %v829 = vpop.f32.mrb[0].mxu0
      %830 = vmatprep.mubr.bf16.mxu0 0
      %831 = vmatmul.mubr.bf16.gmra.mrb[0].mxu0 %v606
      %v832 = vpop.f32.mrb[0].mxu0
      %v833 = vadd.f32 %v628, %v832
      %v834 = vpop.f32.mrb[0].mxu0
      %v835 = vpop.f32.mrb[0].mxu0
      %v836 = vadd.f32 %v628, %v835
      %v837 = vpop.f32.mrb[0].mxu0
      %838 = vdwg.mxu0
      %v839 = vmax.f32 %v713, 0.0
      %v840 = vmax.f32 %v716, 0.0
      %v841 = vmax.f32 %v721, 0.0
      %v842 = vmax.f32 %v724, 0.0
      %v843 = vmax.f32 %v729, 0.0
      %v844 = vmax.f32 %v732, 0.0
      %v845 = vmax.f32 %v737, 0.0
      %v846 = vmax.f32 %v740, 0.0
      %v847 = vmax.f32 %v745, 0.0
      %v848 = vmax.f32 %v748, 0.0
      %v849 = vmax.f32 %v753, 0.0
      %v850 = vmax.f32 %v756, 0.0
      %v851 = vmax.f32 %v761, 0.0
      %v852 = vmax.f32 %v764, 0.0
      %v853 = vmax.f32 %v769, 0.0
      %v854 = vmax.f32 %v772, 0.0
      %v855 = vmax.f32 %v777, 0.0
      %v856 = vmax.f32 %v780, 0.0
      %v857 = vmax.f32 %v785, 0.0
      %v858 = vmax.f32 %v788, 0.0
      %v859 = vmax.f32 %v793, 0.0
      %v860 = vmax.f32 %v796, 0.0
      %v861 = vmax.f32 %v801, 0.0
      %v862 = vmax.f32 %v804, 0.0
      %v863 = vmax.f32 %v809, 0.0
      %v864 = vmax.f32 %v812, 0.0
      %v865 = vmax.f32 %v817, 0.0
      %v866 = vmax.f32 %v820, 0.0
      %v867 = vmax.f32 %v825, 0.0
      %v868 = vmax.f32 %v828, 0.0
      %v869 = vmax.f32 %v833, 0.0
      %v870 = vmax.f32 %v836, 0.0
      %v871 = vpack.c.bf16 %v840, %v839
      %v872 = vpack.c.bf16 %v842, %v841
      %v873 = vpack.c.bf16 %v844, %v843
      %v874 = vpack.c.bf16 %v846, %v845
      %v875 = vpack.c.bf16 %v848, %v847
      %v876 = vpack.c.bf16 %v850, %v849
      %v877 = vpack.c.bf16 %v852, %v851
      %v878 = vpack.c.bf16 %v854, %v853
      %v879 = vpack.c.bf16 %v856, %v855
      %v880 = vpack.c.bf16 %v858, %v857
      %v881 = vpack.c.bf16 %v860, %v859
      %v882 = vpack.c.bf16 %v862, %v861
      %v883 = vpack.c.bf16 %v864, %v863
      %v884 = vpack.c.bf16 %v866, %v865
      %v885 = vpack.c.bf16 %v868, %v867
      %v886 = vpack.c.bf16 %v870, %v869
      %v887 = vld [vmem:[%s5] sm:$0xf]
      %v888 = vld [vmem:[%s5 + $0x4] sm:$0xf]
      %v889 = vld [vmem:[%s5 + $0x8] sm:$0xf]
      %v890 = vld [vmem:[%s5 + $0xc] sm:$0xf]
      %v891 = vld [vmem:[%s5 + $0x10] sm:$0xf]
      %v892 = vld [vmem:[%s5 + $0x14] sm:$0xf]
      %v893 = vld [vmem:[%s5 + $0x18] sm:$0xf]
      %v894 = vld [vmem:[%s5 + $0x1c] sm:$0xf]
      %v895 = vld [vmem:[%s5 + $0x20] sm:$0xf]
      %v896 = vld [vmem:[%s5 + $0x24] sm:$0xf]
      %v897 = vld [vmem:[%s5 + $0x28] sm:$0xf]
      %v898 = vld [vmem:[%s5 + $0x2c] sm:$0xf]
      %v899 = vld [vmem:[%s5 + $0x30] sm:$0xf]
      %v900 = vld [vmem:[%s5 + $0x34] sm:$0xf]
      %v901 = vld [vmem:[%s5 + $0x38] sm:$0xf]
      %v902 = vld [vmem:[%s5 + $0x3c] sm:$0xf]
      %v903 = vld [vmem:[%s6] sm:$0x1]
      %v905 = vlaneseq
      %v906 = vshrl.u32 %v905, 7
      %v907 = vsub.s32 0, %v906
      %v908 = vrot.slane %v903, %v907
      %v926 = vunpack.c.l.b16 %v887
      %v927 = vunpack.c.l.b16 %v888
      %v928 = vunpack.c.l.b16 %v889
      %v929 = vunpack.c.l.b16 %v890
      %v930 = vunpack.c.l.b16 %v891
      %v931 = vunpack.c.l.b16 %v892
      %v932 = vunpack.c.l.b16 %v893
      %v933 = vunpack.c.l.b16 %v894
      %v934 = vunpack.c.l.b16 %v895
      %v935 = vunpack.c.l.b16 %v896
      %v936 = vunpack.c.l.b16 %v897
      %v937 = vunpack.c.l.b16 %v898
      %v938 = vunpack.c.l.b16 %v899
      %v939 = vunpack.c.l.b16 %v900
      %v940 = vunpack.c.l.b16 %v901
      %v941 = vunpack.c.l.b16 %v902
      %v942 = vpack.c.b16 %v927, %v926
      %v943 = vpack.c.b16 %v929, %v928
      %v944 = vpack.c.b16 %v931, %v930
      %v945 = vpack.c.b16 %v933, %v932
      %v946 = vpack.c.b16 %v935, %v934
      %v947 = vpack.c.b16 %v937, %v936
      %v948 = vpack.c.b16 %v939, %v938
      %v949 = vpack.c.b16 %v941, %v940
      %958 = vmatprep.subr.bf16.mxu0 0
      %959 = vmatpush1.bf16.msra.mxu0 %v942
      %960 = vmatprep.subr.bf16.mxu0 0
      %961 = vmatpush1.bf16.msra.mxu0 %v943
      %962 = vmatprep.subr.bf16.mxu0 0
      %963 = vmatpush1.bf16.msra.mxu0 %v944
      %964 = vmatprep.subr.bf16.mxu0 0
      %965 = vmatpush1.bf16.msra.mxu0 %v945
      %966 = vmatprep.subr.bf16.mxu0 0
      %967 = vmatpush1.bf16.msra.mxu0 %v946
      %968 = vmatprep.subr.bf16.mxu0 0
      %969 = vmatpush1.bf16.msra.mxu0 %v947
      %970 = vmatprep.subr.bf16.mxu0 0
      %971 = vmatpush1.bf16.msra.mxu0 %v948
      %972 = vmatprep.subr.bf16.mxu0 0
      %973 = vmatpush1.bf16.msra.mxu0 %v949
      %974 = vmatprep.subr.bf16.mxu0 0
      %975 = vmatpush1.bf16.msra.mxu0 0
      %976 = vmatprep.subr.bf16.mxu0 0
      %977 = vmatpush1.bf16.msra.mxu0 0
      %978 = vmatprep.subr.bf16.mxu0 0
      %979 = vmatpush1.bf16.msra.mxu0 0
      %980 = vmatprep.subr.bf16.mxu0 0
      %981 = vmatpush1.bf16.msra.mxu0 0
      %982 = vmatprep.subr.bf16.mxu0 0
      %983 = vmatpush1.bf16.msra.mxu0 0
      %984 = vmatprep.subr.bf16.mxu0 0
      %985 = vmatpush1.bf16.msra.mxu0 0
      %986 = vmatprep.subr.bf16.mxu0 0
      %987 = vmatpush1.bf16.msra.mxu0 0
      %988 = vmatprep.subr.bf16.mxu0 0
      %989 = vmatpush1.bf16.msra.mxu0 0
      %990 = vmatprep.mubr.bf16.mxu0 0
      %991 = vmatmul.mubr.bf16.gmra.mrb[0].mxu0 %v871
      %v992 = vpop.f32.mrb[0].mxu0
      %v993 = vadd.f32 %v908, %v992
      %v994 = vpop.f32.mrb[0].mxu0
      %v995 = vpop.f32.mrb[0].mxu0
      %v996 = vadd.f32 %v908, %v995
      %v997 = vpop.f32.mrb[0].mxu0
      %998 = vmatprep.mubr.bf16.mxu0 0
      %999 = vmatmul.mubr.bf16.gmra.mrb[0].mxu0 %v872
      %v1000 = vpop.f32.mrb[0].mxu0
      %v1001 = vadd.f32 %v908, %v1000
      %v1002 = vpop.f32.mrb[0].mxu0
      %v1003 = vpop.f32.mrb[0].mxu0
      %v1004 = vadd.f32 %v908, %v1003
      %v1005 = vpop.f32.mrb[0].mxu0
      %1006 = vmatprep.mubr.bf16.mxu0 0
      %1007 = vmatmul.mubr.bf16.gmra.mrb[0].mxu0 %v873
      %v1008 = vpop.f32.mrb[0].mxu0
      %v1009 = vadd.f32 %v908, %v1008
      %v1010 = vpop.f32.mrb[0].mxu0
      %v1011 = vpop.f32.mrb[0].mxu0
      %v1012 = vadd.f32 %v908, %v1011
      %v1013 = vpop.f32.mrb[0].mxu0
      %1014 = vmatprep.mubr.bf16.mxu0 0
      %1015 = vmatmul.mubr.bf16.gmra.mrb[0].mxu0 %v874
      %v1016 = vpop.f32.mrb[0].mxu0
      %v1017 = vadd.f32 %v908, %v1016
      %v1018 = vpop.f32.mrb[0].mxu0
      %v1019 = vpop.f32.mrb[0].mxu0
      %v1020 = vadd.f32 %v908, %v1019
      %v1021 = vpop.f32.mrb[0].mxu0
      %1022 = vmatprep.mubr.bf16.mxu0 0
      %1023 = vmatmul.mubr.bf16.gmra.mrb[0].mxu0 %v875
      %v1024 = vpop.f32.mrb[0].mxu0
      %v1025 = vadd.f32 %v908, %v1024
      %v1026 = vpop.f32.mrb[0].mxu0
      %v1027 = vpop.f32.mrb[0].mxu0
      %v1028 = vadd.f32 %v908, %v1027
      %v1029 = vpop.f32.mrb[0].mxu0
      %1030 = vmatprep.mubr.bf16.mxu0 0
      %1031 = vmatmul.mubr.bf16.gmra.mrb[0].mxu0 %v876
      %v1032 = vpop.f32.mrb[0].mxu0
      %v1033 = vadd.f32 %v908, %v1032
      %v1034 = vpop.f32.mrb[0].mxu0
      %v1035 = vpop.f32.mrb[0].mxu0
      %v1036 = vadd.f32 %v908, %v1035
      %v1037 = vpop.f32.mrb[0].mxu0
      %1038 = vmatprep.mubr.bf16.mxu0 0
      %1039 = vmatmul.mubr.bf16.gmra.mrb[0].mxu0 %v877
      %v1040 = vpop.f32.mrb[0].mxu0
      %v1041 = vadd.f32 %v908, %v1040
      %v1042 = vpop.f32.mrb[0].mxu0
      %v1043 = vpop.f32.mrb[0].mxu0
      %v1044 = vadd.f32 %v908, %v1043
      %v1045 = vpop.f32.mrb[0].mxu0
      %1046 = vmatprep.mubr.bf16.mxu0 0
      %1047 = vmatmul.mubr.bf16.gmra.mrb[0].mxu0 %v878
      %v1048 = vpop.f32.mrb[0].mxu0
      %v1049 = vadd.f32 %v908, %v1048
      %v1050 = vpop.f32.mrb[0].mxu0
      %v1051 = vpop.f32.mrb[0].mxu0
      %v1052 = vadd.f32 %v908, %v1051
      %v1053 = vpop.f32.mrb[0].mxu0
      %1054 = vmatprep.mubr.bf16.mxu0 0
      %1055 = vmatmul.mubr.bf16.gmra.mrb[0].mxu0 %v879
      %v1056 = vpop.f32.mrb[0].mxu0
      %v1057 = vadd.f32 %v908, %v1056
      %v1058 = vpop.f32.mrb[0].mxu0
      %v1059 = vpop.f32.mrb[0].mxu0
      %v1060 = vadd.f32 %v908, %v1059
      %v1061 = vpop.f32.mrb[0].mxu0
      %1062 = vmatprep.mubr.bf16.mxu0 0
      %1063 = vmatmul.mubr.bf16.gmra.mrb[0].mxu0 %v880
      %v1064 = vpop.f32.mrb[0].mxu0
      %v1065 = vadd.f32 %v908, %v1064
      %v1066 = vpop.f32.mrb[0].mxu0
      %v1067 = vpop.f32.mrb[0].mxu0
      %v1068 = vadd.f32 %v908, %v1067
      %v1069 = vpop.f32.mrb[0].mxu0
      %1070 = vmatprep.mubr.bf16.mxu0 0
      %1071 = vmatmul.mubr.bf16.gmra.mrb[0].mxu0 %v881
      %v1072 = vpop.f32.mrb[0].mxu0
      %v1073 = vadd.f32 %v908, %v1072
      %v1074 = vpop.f32.mrb[0].mxu0
      %v1075 = vpop.f32.mrb[0].mxu0
      %v1076 = vadd.f32 %v908, %v1075
      %v1077 = vpop.f32.mrb[0].mxu0
      %1078 = vmatprep.mubr.bf16.mxu0 0
      %1079 = vmatmul.mubr.bf16.gmra.mrb[0].mxu0 %v882
      %v1080 = vpop.f32.mrb[0].mxu0
      %v1081 = vadd.f32 %v908, %v1080
      %v1082 = vpop.f32.mrb[0].mxu0
      %v1083 = vpop.f32.mrb[0].mxu0
      %v1084 = vadd.f32 %v908, %v1083
      %v1085 = vpop.f32.mrb[0].mxu0
      %1086 = vmatprep.mubr.bf16.mxu0 0
      %1087 = vmatmul.mubr.bf16.gmra.mrb[0].mxu0 %v883
      %v1088 = vpop.f32.mrb[0].mxu0
      %v1089 = vadd.f32 %v908, %v1088
      %v1090 = vpop.f32.mrb[0].mxu0
      %v1091 = vpop.f32.mrb[0].mxu0
      %v1092 = vadd.f32 %v908, %v1091
      %v1093 = vpop.f32.mrb[0].mxu0
      %1094 = vmatprep.mubr.bf16.mxu0 0
      %1095 = vmatmul.mubr.bf16.gmra.mrb[0].mxu0 %v884
      %v1096 = vpop.f32.mrb[0].mxu0
      %v1097 = vadd.f32 %v908, %v1096
      %v1098 = vpop.f32.mrb[0].mxu0
      %v1099 = vpop.f32.mrb[0].mxu0
      %v1100 = vadd.f32 %v908, %v1099
      %v1101 = vpop.f32.mrb[0].mxu0
      %1102 = vmatprep.mubr.bf16.mxu0 0
      %1103 = vmatmul.mubr.bf16.gmra.mrb[0].mxu0 %v885
      %v1104 = vpop.f32.mrb[0].mxu0
      %v1105 = vadd.f32 %v908, %v1104
      %v1106 = vpop.f32.mrb[0].mxu0
      %v1107 = vpop.f32.mrb[0].mxu0
      %v1108 = vadd.f32 %v908, %v1107
      %v1109 = vpop.f32.mrb[0].mxu0
      %1110 = vmatprep.mubr.bf16.mxu0 0
      %1111 = vmatmul.mubr.bf16.gmra.mrb[0].mxu0 %v886
      %v1112 = vpop.f32.mrb[0].mxu0
      %v1113 = vadd.f32 %v908, %v1112
      %v1114 = vpop.f32.mrb[0].mxu0
      %v1115 = vpop.f32.mrb[0].mxu0
      %v1116 = vadd.f32 %v908, %v1115
      %v1117 = vpop.f32.mrb[0].mxu0
      %1118 = vdwg.mxu0
      %v1119 = vpack.c.bf16 %v996, %v993
      %v1120 = vpack.c.bf16 %v1004, %v1001
      %v1121 = vpack.c.bf16 %v1012, %v1009
      %v1122 = vpack.c.bf16 %v1020, %v1017
      %v1123 = vpack.c.bf16 %v1028, %v1025
      %v1124 = vpack.c.bf16 %v1036, %v1033
      %v1125 = vpack.c.bf16 %v1044, %v1041
      %v1126 = vpack.c.bf16 %v1052, %v1049
      %v1127 = vpack.c.bf16 %v1060, %v1057
      %v1128 = vpack.c.bf16 %v1068, %v1065
      %v1129 = vpack.c.bf16 %v1076, %v1073
      %v1130 = vpack.c.bf16 %v1084, %v1081
      %v1131 = vpack.c.bf16 %v1092, %v1089
      %v1132 = vpack.c.bf16 %v1100, %v1097
      %v1133 = vpack.c.bf16 %v1108, %v1105
      %v1134 = vpack.c.bf16 %v1116, %v1113
      %v1151 = vunpack.c.l.b16 %v1119
      %v1152 = vunpack.c.h.b16 %v1119
      %v1153 = vunpack.c.l.b16 %v1120
      %v1154 = vunpack.c.h.b16 %v1120
      %v1155 = vunpack.c.l.b16 %v1121
      %v1156 = vunpack.c.h.b16 %v1121
      %v1157 = vunpack.c.l.b16 %v1122
      %v1158 = vunpack.c.h.b16 %v1122
      %v1159 = vunpack.c.l.b16 %v1123
      %v1160 = vunpack.c.h.b16 %v1123
      %v1161 = vunpack.c.l.b16 %v1124
      %v1162 = vunpack.c.h.b16 %v1124
      %v1163 = vunpack.c.l.b16 %v1125
      %v1164 = vunpack.c.h.b16 %v1125
      %v1165 = vunpack.c.l.b16 %v1126
      %v1166 = vunpack.c.h.b16 %v1126
      %v1167 = vunpack.c.l.b16 %v1127
      %v1168 = vunpack.c.h.b16 %v1127
      %v1169 = vunpack.c.l.b16 %v1128
      %v1170 = vunpack.c.h.b16 %v1128
      %v1171 = vunpack.c.l.b16 %v1129
      %v1172 = vunpack.c.h.b16 %v1129
      %v1173 = vunpack.c.l.b16 %v1130
      %v1174 = vunpack.c.h.b16 %v1130
      %v1175 = vunpack.c.l.b16 %v1131
      %v1176 = vunpack.c.h.b16 %v1131
      %v1177 = vunpack.c.l.b16 %v1132
      %v1178 = vunpack.c.h.b16 %v1132
      %v1179 = vunpack.c.l.b16 %v1133
      %v1180 = vunpack.c.h.b16 %v1133
      %v1181 = vunpack.c.l.b16 %v1134
      %v1182 = vunpack.c.h.b16 %v1134
      %v1183 = vpack.c.b16 %v1151, %v1151
      %v1184 = vpack.c.b16 %v1152, %v1152
      %v1185 = vpack.c.b16 %v1153, %v1153
      %v1186 = vpack.c.b16 %v1154, %v1154
      %v1187 = vpack.c.b16 %v1155, %v1155
      %v1188 = vpack.c.b16 %v1156, %v1156
      %v1189 = vpack.c.b16 %v1157, %v1157
      %v1190 = vpack.c.b16 %v1158, %v1158
      %v1191 = vpack.c.b16 %v1159, %v1159
      %v1192 = vpack.c.b16 %v1160, %v1160
      %v1193 = vpack.c.b16 %v1161, %v1161
      %v1194 = vpack.c.b16 %v1162, %v1162
      %v1195 = vpack.c.b16 %v1163, %v1163
      %v1196 = vpack.c.b16 %v1164, %v1164
      %v1197 = vpack.c.b16 %v1165, %v1165
      %v1198 = vpack.c.b16 %v1166, %v1166
      %v1199 = vpack.c.b16 %v1167, %v1167
      %v1200 = vpack.c.b16 %v1168, %v1168
      %v1201 = vpack.c.b16 %v1169, %v1169
      %v1202 = vpack.c.b16 %v1170, %v1170
      %v1203 = vpack.c.b16 %v1171, %v1171
      %v1204 = vpack.c.b16 %v1172, %v1172
      %v1205 = vpack.c.b16 %v1173, %v1173
      %v1206 = vpack.c.b16 %v1174, %v1174
      %v1207 = vpack.c.b16 %v1175, %v1175
      %v1208 = vpack.c.b16 %v1176, %v1176
      %v1209 = vpack.c.b16 %v1177, %v1177
      %v1210 = vpack.c.b16 %v1178, %v1178
      %v1211 = vpack.c.b16 %v1179, %v1179
      %v1212 = vpack.c.b16 %v1180, %v1180
      %v1213 = vpack.c.b16 %v1181, %v1181
      %v1214 = vpack.c.b16 %v1182, %v1182
      %1247 = vst [vmem:[%s280] sm:$0xf] %v1183
      %1248 = vst [vmem:[%s280 + $0x4] sm:$0xf] %v1184
      %1249 = vst [vmem:[%s280 + $0x8] sm:$0xf] %v1185
      %1250 = vst [vmem:[%s280 + $0xc] sm:$0xf] %v1186
      %1251 = vst [vmem:[%s280 + $0x10] sm:$0xf] %v1187
      %1252 = vst [vmem:[%s280 + $0x14] sm:$0xf] %v1188
      %1253 = vst [vmem:[%s280 + $0x18] sm:$0xf] %v1189
      %1254 = vst [vmem:[%s280 + $0x1c] sm:$0xf] %v1190
      %1255 = vst [vmem:[%s280 + $0x20] sm:$0xf] %v1191
      %1256 = vst [vmem:[%s280 + $0x24] sm:$0xf] %v1192
      %1257 = vst [vmem:[%s280 + $0x28] sm:$0xf] %v1193
      %1258 = vst [vmem:[%s280 + $0x2c] sm:$0xf] %v1194
      %1259 = vst [vmem:[%s280 + $0x30] sm:$0xf] %v1195
      %1260 = vst [vmem:[%s280 + $0x34] sm:$0xf] %v1196
      %1261 = vst [vmem:[%s280 + $0x38] sm:$0xf] %v1197
      %1262 = vst [vmem:[%s280 + $0x3c] sm:$0xf] %v1198
      %1263 = vst [vmem:[%s280 + $0x40] sm:$0xf] %v1199
      %1264 = vst [vmem:[%s280 + $0x44] sm:$0xf] %v1200
      %1265 = vst [vmem:[%s280 + $0x48] sm:$0xf] %v1201
      %1266 = vst [vmem:[%s280 + $0x4c] sm:$0xf] %v1202
      %1267 = vst [vmem:[%s280 + $0x50] sm:$0xf] %v1203
      %1268 = vst [vmem:[%s280 + $0x54] sm:$0xf] %v1204
      %1269 = vst [vmem:[%s280 + $0x58] sm:$0xf] %v1205
      %1270 = vst [vmem:[%s280 + $0x5c] sm:$0xf] %v1206
      %1271 = vst [vmem:[%s280 + $0x60] sm:$0xf] %v1207
      %1272 = vst [vmem:[%s280 + $0x64] sm:$0xf] %v1208
      %1273 = vst [vmem:[%s280 + $0x68] sm:$0xf] %v1209
      %1274 = vst [vmem:[%s280 + $0x6c] sm:$0xf] %v1210
      %1275 = vst [vmem:[%s280 + $0x70] sm:$0xf] %v1211
      %1276 = vst [vmem:[%s280 + $0x74] sm:$0xf] %v1212
      %1277 = vst [vmem:[%s280 + $0x78] sm:$0xf] %v1213
      %1278 = vst [vmem:[%s280 + $0x7c] sm:$0xf] %v1214
      %s1279 = smul.u32 32, %s18
      %p1280 = scmp.lt.s32.totalorder %s1279, 63
      %s1281 = scalar_select %p1280, %s1279, 63
      %s1282 = smul.addr %s1281, 4
      %s1283 = scalar_lea.vmem %s7, %s1282
      // Predicated region
      $region49: #{actor_forward.1} parent=47 // pred_check
        %p1284 = pneg %p188
      $region50: #{actor_forward.1} parent=47 // pred_check_branch
        %1286 = sbr.rel (%p1284) target = $region52
      $region51: #{actor_forward.1} parent=47 // pred_region
        %s1287 = smul.u32 32, %s18
      $region52: #{actor_forward.1} parent=47 // pred_fallthru
        _
    $region48: #{actor_forward.1} parent=5 // pred_fallthru
      _
    %p1288 = scmp.le.s32.totalorder 2, %s13
    // Predicated region
    $region53: #{actor_forward.1} parent=5 // pred_check
      %p1289 = pneg %p1288
    $region54: #{actor_forward.1} parent=5 // pred_check_branch
      %1291 = sbr.rel (%p1289) target = $region56
    $region55: #{actor_forward.1} parent=5 // pred_region
      %s1292 = ssub.s32 %s13, 2
      // Predicated region
      $region57: #{actor_forward.1} parent=55 // pred_check
        %p1293 = pneg %p194
      $region58: #{actor_forward.1} parent=55 // pred_check_branch
        %1295 = sbr.rel (%p1293) target = $region60
      $region59: #{actor_forward.1} parent=55 // pred_region
        %s1296 = smul.u32 32, %s19
        %p1297 = scmp.lt.s32.totalorder %s1296, 63
        %s1298 = scalar_select %p1297, %s1296, 63
        %s1299 = smul.addr %s1298, 4
        %s1300 = scalar_lea.vmem %s7, %s1299
      $region60: #{actor_forward.1} parent=55 // pred_fallthru
        _
    $region56: #{actor_forward.1} parent=5 // pred_fallthru
      _
  $region6: #{actor_forward.1} parent=0 // loop_footer
    %s17 = sadd.s32 1, %s13
  $region7: #{actor_forward.1} parent=0 // loop_footer_branch
    %12 = sbr.rel target = $region3
  $region8: #{actor_forward.1} parent=0 // loop_exit
    _

</llo_original>
